<compile_context>
chip_gen: v7x
topology: tpu7x:2x2x1
jax: 0.10.0
libtpu: 0.0.40
codegen_flags: <defaults>
</compile_context>

<pallas_src>
import functools

import jax
import jax.numpy as jnp
from jax import lax
from jax.experimental import pallas as pl
from jax.experimental.pallas import tpu as pltpu

_LANES = 128                  # lane width of the flattened fallback presentation
_TILE_BYTES = 4 << 20         # ~4 MiB of input per grid step (8 MiB double-buffered)
_CHUNK_BYTES = 64 << 10       # ~64 KiB per inner accumulation step (vreg pressure)
_MAX_NATURAL_LANES = 1024     # reuse the tensor's own last dim as lanes up to this
_VMEM_LIMIT = 32 * 1024 * 1024


def _round_up(n, m):
    return -(-n // m) * m


def _num_tensorcores():
    """2 on v7x-class chips (two TensorCores per chip), else 1."""
    try:
        kind = jax.devices()[0].device_kind.lower()
    except Exception:
        return 1
    return 2 if "7" in kind else 1


def _partial_sum_kernel(x_ref, o_ref, *, rows, tile_rows, lanes, chunk_rows,
                        blocks_per_core, has_edge, use_mxu):
    """Accumulate a per-core (8, lanes) f32 partial sum of the input rows."""
    c = pl.program_id(0)             # core axis (size 1, or 2 on v7x)
    i = pl.program_id(1)             # reduction axis ("arbitrary")
    g = c * blocks_per_core + i      # global block index
    n_chunks = tile_rows // chunk_rows

    @pl.when(i == 0)
    def _():
        o_ref[...] = jnp.zeros_like(o_ref)

    if use_mxu:
        # bf16: reduce rows on the MXU (vector-extended slot) with native f32
        # accumulation, leaving the VPU idle.  Row 0 of `sel` is ones and rows
        # 1..7 are zeros, so row 0 of the product holds the column sums and the
        # final cross-partial jnp.sum stays exact (no 8x double counting).
        sel = (lax.broadcasted_iota(jnp.int32, (8, chunk_rows), 0) == 0
               ).astype(x_ref.dtype)

    def _plain_chunk(j, acc):
        start = pl.multiple_of(j * chunk_rows, chunk_rows)
        v = x_ref[pl.ds(start, chunk_rows), :]
        if use_mxu:
            return acc + jnp.dot(sel, v, preferred_element_type=jnp.float32)
        v = v.astype(jnp.float32)
        return acc + v.reshape(-1, 8, lanes).sum(axis=0)

    def _accumulate_plain():
        zero = jnp.zeros((8, lanes), jnp.float32)
        o_ref[...] += lax.fori_loop(0, n_chunks, _plain_chunk, zero,
                                    unroll=n_chunks <= 8)

    if not has_edge:
        # Every block of this launch is fully in-range: no mask code at all.
        _accumulate_plain()
        return

    block_start = g * tile_rows

    @pl.when(block_start + tile_rows <= rows)
    def _():                         # interior block: plain cast + add
        _accumulate_plain()

    @pl.when(jnp.logical_and(block_start < rows,
                             block_start + tile_rows > rows))
    def _():                         # the single partial block: mask pad rows
        def _masked_chunk(j, acc):
            start = pl.multiple_of(j * chunk_rows, chunk_rows)
            v = x_ref[pl.ds(start, chunk_rows), :].astype(jnp.float32)
            row_ids = (lax.broadcasted_iota(jnp.int32, v.shape, 0)
                       + block_start + start)
            v = jnp.where(row_ids < rows, v, 0.0)
            return acc + v.reshape(-1, 8, lanes).sum(axis=0)

        zero = jnp.zeros((8, lanes), jnp.float32)
        o_ref[...] += lax.fori_loop(0, n_chunks, _masked_chunk, zero,
                                    unroll=n_chunks <= 8)

    # Fully-phantom blocks (block_start >= rows; only possible with the 2-core
    # split when nblocks is odd) skip both branches and contribute nothing.


def _partial_sums(mat, *, rows, lanes, tile_rows, chunk_rows, nblocks,
                  num_cores, core_parallel, buffer_count):
    blocks_per_core = pl.cdiv(nblocks, num_cores)
    # True iff some block (edge or phantom) is not fully in-range.
    has_edge = (num_cores * blocks_per_core * tile_rows) != rows

    kernel = functools.partial(
        _partial_sum_kernel,
        rows=rows, tile_rows=tile_rows, lanes=lanes, chunk_rows=chunk_rows,
        blocks_per_core=blocks_per_core, has_edge=has_edge,
        use_mxu=(mat.dtype == jnp.bfloat16))

    def in_index_map(c, i):
        # Phantom trailing blocks of the 2-core split clamp onto the last real
        # block; the kernel skips their accumulation entirely.
        return (jnp.minimum(c * blocks_per_core + i, nblocks - 1), 0)

    spec_kwargs = {}
    if buffer_count != 2:
        spec_kwargs["pipeline_mode"] = pl.Buffered(buffer_count)

    if core_parallel:
        semantics = (pltpu.CORE_PARALLEL, pltpu.ARBITRARY)
    else:
        semantics = ("arbitrary", "arbitrary")

    return pl.pallas_call(
        kernel,
        out_shape=jax.ShapeDtypeStruct((num_cores * 8, lanes), jnp.float32),
        grid=(num_cores, blocks_per_core),
        in_specs=[pl.BlockSpec((tile_rows, lanes), in_index_map, **spec_kwargs)],
        out_specs=pl.BlockSpec((8, lanes), lambda c, i: (c, 0)),
        compiler_params=pltpu.CompilerParams(
            dimension_semantics=semantics,
            vmem_limit_bytes=_VMEM_LIMIT),
        cost_estimate=pl.CostEstimate(
            flops=mat.size,
            transcendentals=0,
            bytes_accessed=mat.size * mat.dtype.itemsize
                           + num_cores * 8 * lanes * 4),
    )(mat)


def plain_mean_loss(x):
    """JAX/Pallas equivalent of PlainMeanLoss.forward(x) == torch.mean(x)."""
    total = x.size
    if total == 0:
        return jnp.full((), jnp.nan, dtype=x.dtype)   # torch.mean(empty) -> nan

    tail_sum = 0.0
    if (x.ndim >= 2 and x.shape[-1] % _LANES == 0
            and 0 < x.shape[-1] <= _MAX_NATURAL_LANES):
        # Common ML case: the natural last dim is already lane-aligned, so the
        # (rows, lanes) presentation is a free view (no relayout copy).
        lanes = x.shape[-1]
        mat = x.reshape(-1, lanes)
    else:
        # Flatten and reduce the lane-aligned prefix in the kernel; the <128
        # element ragged tail is summed in plain JAX (no full-tensor pad copy).
        lanes = _LANES
        flat = x.reshape(-1)
        main_n = (total // _LANES) * _LANES
        if main_n == 0:
            # Smaller than a single vreg row: a kernel launch is not worthwhile.
            return jnp.mean(x)
        if main_n != total:
            tail_sum = jnp.sum(flat[main_n:], dtype=jnp.float32)
            flat = flat[:main_n]
        mat = flat.reshape(-1, _LANES)

    rows = mat.shape[0]
    itemsize = mat.dtype.itemsize

    # ~64 KiB inner chunks (multiples of 32 rows cover every dtype's sublane
    # packing) bound vreg live ranges; ~4 MiB blocks keep the serial grid
    # HBM-bandwidth bound on every TPU generation.
    chunk_rows = max(32, (_CHUNK_BYTES // (lanes * itemsize)) // 32 * 32)
    chunk_rows = min(chunk_rows, _round_up(rows, 32))
    chunks_per_tile = max(1, _TILE_BYTES // (chunk_rows * lanes * itemsize))
    tile_rows = min(chunk_rows * chunks_per_tile, _round_up(rows, chunk_rows))
    nblocks = pl.cdiv(rows, tile_rows)

    kwargs = dict(rows=rows, lanes=lanes, tile_rows=tile_rows,
                  chunk_rows=chunk_rows, nblocks=nblocks)

    # Only v7x has two TensorCores per chip; on v5e/v6e the split is pure
    # overhead, so gate it on the chip generation.
    if _num_tensorcores() >= 2 and nblocks >= 2:
        try:
            partials = _partial_sums(mat, num_cores=2, core_parallel=True,
                                     buffer_count=3, **kwargs)
        except Exception:
            # Conservative fallback if CORE_PARALLEL / Buffered(3) does not
            # lower on the installed Pallas/Mosaic version.
            partials = _partial_sums(mat, num_cores=1, core_parallel=False,
                                     buffer_count=2, **kwargs)
    else:
        partials = _partial_sums(mat, num_cores=1, core_parallel=False,
                                 buffer_count=2, **kwargs)

    mean = (jnp.sum(partials, dtype=jnp.float32) + tail_sum) / jnp.float32(total)
    # TODO(synk): torch.mean raises on integer tensors; floating input assumed.
    return mean.astype(x.dtype)


if __name__ == "__main__":
    # PlainMeanLoss has no parameters; only the input tensor is needed.
    key = jax.random.PRNGKey(0)
    x = jax.random.normal(key, (2, 4, 16, 16), dtype=jnp.float32)  # NCHW

    loss = jax.block_until_ready(plain_mean_loss(x))
    ref = jnp.mean(x)
    assert jnp.allclose(loss, ref, atol=1e-6, rtol=1e-6), (loss, ref)

    # Exercise the copy-free natural-lane path (last dim multiple of 128).
    x2 = jax.random.normal(jax.random.PRNGKey(0), (2, 8, 256), dtype=jnp.float32)
    loss2 = jax.block_until_ready(plain_mean_loss(x2))
    assert jnp.allclose(loss2, jnp.mean(x2), atol=1e-6, rtol=1e-6), (loss2,)

    # Exercise the ragged-tail path (total not a multiple of 128).
    x3 = jax.random.normal(jax.random.PRNGKey(0), (3, 5, 13), dtype=jnp.float32)
    loss3 = jax.block_until_ready(plain_mean_loss(x3))
    assert jnp.allclose(loss3, jnp.mean(x3), atol=1e-6, rtol=1e-6), (loss3,)

    print("KERNEL_OK")
</pallas_src>

<mosaic_0001>
module attributes {stable_mosaic.version = 11 : i64} {
  func.func @_partial_sum_kernel(%arg0: i32, %arg1: i32, %arg2: memref<32x128xf32, #tpu.memory_space<vmem>>, %arg3: memref<8x128xf32, #tpu.memory_space<vmem>>) attributes {dimension_semantics = [#tpu.dimension_semantics<arbitrary>, #tpu.dimension_semantics<arbitrary>], iteration_bounds = array<i64: 1, 1>, scalar_prefetch = 0 : i64, scratch_operands = 0 : i64, tpu.core_type = #tpu.core_type<tc>, window_params = [{transform_indices = @transform_0, window_bounds = array<i64: 32, 128>}, {transform_indices = @transform_1, window_bounds = array<i64: 8, 128>}]} {
    %c1_i32 = arith.constant 1 : i32
    %0 = arith.muli %arg0, %c1_i32 : i32
    %1 = arith.addi %0, %arg1 : i32
    %c0_i32 = arith.constant 0 : i32
    %2 = arith.cmpi eq, %arg1, %c0_i32 : i32
    %3 = arith.extui %2 : i1 to i32
    %c0_i32_0 = arith.constant 0 : i32
    %4 = arith.cmpi ne, %3, %c0_i32_0 : i32
    scf.if %4 {
      %cst = arith.constant 0.000000e+00 : f32
      %16 = vector.broadcast %cst : f32 to vector<8x128xf32>
      %c0 = arith.constant 0 : index
      %c0_7 = arith.constant 0 : index
      %17 = vector.load %arg3[%c0, %c0_7] : memref<8x128xf32, #tpu.memory_space<vmem>>, vector<8x128xf32>
      tpu.vector_store %arg3[%c0, %c0_7], %16 {strides = array<i32>} : memref<8x128xf32, #tpu.memory_space<vmem>>, vector<8x128xf32>,
    } else {
    }
    %c32_i32 = arith.constant 32 : i32
    %5 = arith.muli %1, %c32_i32 : i32
    %c32_i32_1 = arith.constant 32 : i32
    %6 = arith.addi %5, %c32_i32_1 : i32
    %c16_i32 = arith.constant 16 : i32
    %7 = arith.cmpi sle, %6, %c16_i32 : i32
    %8 = arith.extui %7 : i1 to i32
    %c0_i32_2 = arith.constant 0 : i32
    %9 = arith.cmpi ne, %8, %c0_i32_2 : i32
    scf.if %9 {
      %cst = arith.constant 0.000000e+00 : f32
      %16 = vector.broadcast %cst : f32 to vector<8x128xf32>
      %c0 = arith.constant 0 : index
      %c0_7 = arith.constant 0 : index
      %17 = vector.load %arg3[%c0, %c0_7] : memref<8x128xf32, #tpu.memory_space<vmem>>, vector<8x128xf32>
      %c0_i32_8 = arith.constant 0 : i32
      %c32_i32_9 = arith.constant 32 : i32
      %18 = arith.muli %c0_i32_8, %c32_i32_9 : i32
      %19 = tpu.assume_multiple %18, 32 : i32
      %20 = arith.index_cast %19 : i32 to index
      %c0_10 = arith.constant 0 : index
      %21 = vector.load %arg2[%20, %c0_10] : memref<32x128xf32, #tpu.memory_space<vmem>>, vector<32x128xf32>
      %22 = vector.shape_cast %21 : vector<32x128xf32> to vector<4x8x128xf32>
      %cst_11 = arith.constant dense<0.000000e+00> : vector<8x128xf32>
      %23 = vector.multi_reduction <add>, %22, %cst_11 [0] : vector<4x8x128xf32> to vector<8x128xf32>
      %24 = arith.addf %16, %23 : vector<8x128xf32>
      %c1_i32_12 = arith.constant 1 : i32
      %25 = arith.addf %17, %24 : vector<8x128xf32>
      %c0_13 = arith.constant 0 : index
      %c0_14 = arith.constant 0 : index
      %26 = vector.load %arg3[%c0_13, %c0_14] : memref<8x128xf32, #tpu.memory_space<vmem>>, vector<8x128xf32>
      tpu.vector_store %arg3[%c0_13, %c0_14], %25 {strides = array<i32>} : memref<8x128xf32, #tpu.memory_space<vmem>>, vector<8x128xf32>,
    } else {
    }
    %c16_i32_3 = arith.constant 16 : i32
    %10 = arith.cmpi slt, %5, %c16_i32_3 : i32
    %c32_i32_4 = arith.constant 32 : i32
    %11 = arith.addi %5, %c32_i32_4 : i32
    %c16_i32_5 = arith.constant 16 : i32
    %12 = arith.cmpi sgt, %11, %c16_i32_5 : i32
    %13 = arith.andi %10, %12 : i1
    %14 = arith.extui %13 : i1 to i32
    %c0_i32_6 = arith.constant 0 : i32
    %15 = arith.cmpi ne, %14, %c0_i32_6 : i32
    scf.if %15 {
      %cst = arith.constant 0.000000e+00 : f32
      %16 = vector.broadcast %cst : f32 to vector<8x128xf32>
      %c0 = arith.constant 0 : index
      %c0_7 = arith.constant 0 : index
      %17 = vector.load %arg3[%c0, %c0_7] : memref<8x128xf32, #tpu.memory_space<vmem>>, vector<8x128xf32>
      %c0_i32_8 = arith.constant 0 : i32
      %c32_i32_9 = arith.constant 32 : i32
      %18 = arith.muli %c0_i32_8, %c32_i32_9 : i32
      %19 = tpu.assume_multiple %18, 32 : i32
      %20 = arith.index_cast %19 : i32 to index
      %c0_10 = arith.constant 0 : index
      %21 = vector.load %arg2[%20, %c0_10] : memref<32x128xf32, #tpu.memory_space<vmem>>, vector<32x128xf32>
      %22 = tpu.iota {dimensions = array<i32: 0>} : vector<32x128xi32>
      %23 = vector.broadcast %5 : i32 to vector<32x128xi32>
      %24 = arith.addi %22, %23 : vector<32x128xi32>
      %25 = vector.broadcast %19 : i32 to vector<32x128xi32>
      %26 = arith.addi %24, %25 : vector<32x128xi32>
      %c16_i32_11 = arith.constant 16 : i32
      %27 = vector.broadcast %c16_i32_11 : i32 to vector<32x128xi32>
      %28 = arith.cmpi slt, %26, %27 : vector<32x128xi32>
      %cst_12 = arith.constant 0.000000e+00 : f32
      %29 = vector.broadcast %cst_12 : f32 to vector<32x128xf32>
      %30 = arith.select %28, %21, %29 : vector<32x128xi1>, vector<32x128xf32>
      %31 = vector.shape_cast %30 : vector<32x128xf32> to vector<4x8x128xf32>
      %cst_13 = arith.constant dense<0.000000e+00> : vector<8x128xf32>
      %32 = vector.multi_reduction <add>, %31, %cst_13 [0] : vector<4x8x128xf32> to vector<8x128xf32>
      %33 = arith.addf %16, %32 : vector<8x128xf32>
      %c1_i32_14 = arith.constant 1 : i32
      %34 = arith.addf %17, %33 : vector<8x128xf32>
      %c0_15 = arith.constant 0 : index
      %c0_16 = arith.constant 0 : index
      %35 = vector.load %arg3[%c0_15, %c0_16] : memref<8x128xf32, #tpu.memory_space<vmem>>, vector<8x128xf32>
      tpu.vector_store %arg3[%c0_15, %c0_16], %34 {strides = array<i32>} : memref<8x128xf32, #tpu.memory_space<vmem>>, vector<8x128xf32>,
    } else {
    }
    return
  }
  func.func @transform_0(%arg0: i32, %arg1: i32) -> (i32, i32) {
    %c1_i32 = arith.constant 1 : i32
    %0 = arith.muli %arg0, %c1_i32 : i32
    %1 = arith.addi %0, %arg1 : i32
    %c0_i32 = arith.constant 0 : i32
    %2 = arith.minsi %1, %c0_i32 : i32
    %c0_i32_0 = arith.constant 0 : i32
    %c0_i32_1 = arith.constant 0 : i32
    return %2, %c0_i32_0 : i32, i32
  }
  func.func @transform_1(%arg0: i32, %arg1: i32) -> (i32, i32) {
    %c0_i32 = arith.constant 0 : i32
    %c0_i32_0 = arith.constant 0 : i32
    return %arg0, %c0_i32 : i32, i32
  }
}

</mosaic_0001>

<llo_original>
// kernel: tpu_custom_call.1
$region0: #{tpu_custom_call.1}
  #allocation0 [shape = 'u32[]', space=smem, size = 0x4, offset = 0x4, fixed_abs, tag = 'smem constant byte address 0x4 - core index']
  #allocation1 [shape = 'u32[144,128]{1,0:T(1,128)}', space=vmem, size = 0x12000, scoped, tag = 'internal scratch']
  %s0 = inlined_call_operand.hbm [shape: f32[16,128], index: 0, kind: input, shape index: {}]
  %s1 = inlined_call_operand.hbm [shape: f32[8,128], index: 1, kind: output, shape index: {}]
  %s2 = sld [smem:[#allocation0]]
  $region30: #{tpu_custom_call.1} parent=0
    _
  %s4 = ssub.s32 1, %s2
  %s5 = scalar_select 0, %s4, %s2
  $region1: #{tpu_custom_call.1} parent=0
    #allocation2 [shape = 'u8[16384]{0}', space=vmem, size = 0x4000, scoped, tag = 'input window, operand 0, single buffered']
    #allocation3 [shape = 's32[1]{0}', space=sflag, size = 0x4, scoped, tag = 'scoped memory for tpu_custom_call.1']
    #allocation4 [shape = 's32[1]{0}', space=sflag, size = 0x4, scoped, tag = 'scoped memory for tpu_custom_call.1']
    #allocation5 [shape = 'u8[4096]{0}', space=vmem, size = 0x1000, scoped, tag = 'output window, operand 0, single buffered']
    %6 = vsyncpa [#allocation3], 0
    %7 = vsyncpa [#allocation4], 0
    // Predicated region
    $region2: #{tpu_custom_call.1} parent=1 // pred_check
      _
    $region3: #{tpu_custom_call.1} parent=1 // pred_check_branch
      %9 = sbr.rel (0) target = $region5
    $region4: #{tpu_custom_call.1} parent=1 // pred_region
      %s10 = sadd.s32 0, 0
      %p11 = scmp.lt.s32.totalorder %s10, 0
      %s12 = scalar_select %p11, %s10, 0
      %s13 = smul.u32 4, %s12
      %s14 = ssub.s32 2, %s13
      %s15 = smul.u32 128, %s14
      %s17 = ssub.s32 512, %s15
      %18 = vsyncadd [#allocation3], %s17
      %p19 = scmp.ne.s32.totalorder 0, %s15
      %s20 = smul.addr %s13, 128
      %s21 = scalar_lea.hbm %s0, %s20
      %s22 = smul.u32 8, %s14
      %s23 = sshll.u32 [#allocation2], 4
      %s24 = int_to_ptr.vmem [resolvable:$true] %s23
      %s25 = sshll.u32 %s22, 4
      %29 = dma.hbm_to_vmem [thread:$0]  (%p19), %s21, %s25, %s24, [#allocation3], 128, 128, 8
    $region5: #{tpu_custom_call.1} parent=1 // pred_fallthru
      _
    // Predicated region
    $region6: #{tpu_custom_call.1} parent=1 // pred_check
      _
    $region7: #{tpu_custom_call.1} parent=1 // pred_check_branch
      %31 = sbr.rel (0) target = $region9
    $region8: #{tpu_custom_call.1} parent=1 // pred_region
      %32 = dma.done [#allocation3], 512
    $region9: #{tpu_custom_call.1} parent=1 // pred_fallthru
      _
    %s33 = sadd.s32 0, 0
    %p34 = scmp.lt.s32.totalorder %s33, 0
    %s35 = scalar_select %p34, %s33, 0
    %s36 = smul.u32 4, %s35
    %s37 = ssub.s32 2, %s36
    %s38 = smul.u32 128, %s37
    %s39 = sadd.s32 0, 0
    %p40 = scmp.eq.s32.totalorder 0, 0
    // Predicated region
    $region10: #{tpu_custom_call.1} parent=1 // pred_check
      %p41 = pneg %p40
    $region11: #{tpu_custom_call.1} parent=1 // pred_check_branch
      %43 = sbr.rel (%p41) target = $region13
    $region12: #{tpu_custom_call.1} parent=1 // pred_region
      %44 = vst [vmem:[#allocation5] sm:$0xff] 0.0
    $region13: #{tpu_custom_call.1} parent=1 // pred_fallthru
      _
    %s45 = smul.u32 %s39, 32
    %s46 = sadd.s32 %s45, 32
    %p47 = scmp.le.s32.totalorder %s46, 16
    // Predicated region
    $region14: #{tpu_custom_call.1} parent=1 // pred_check
      %p48 = pneg %p47
    $region15: #{tpu_custom_call.1} parent=1 // pred_check_branch
      %50 = sbr.rel (%p48) target = $region17
    $region16: #{tpu_custom_call.1} parent=1 // pred_region
      %v51 = vld [vmem:[#allocation5] sm:$0xff]
      %v52 = vld [vmem:[#allocation2] sm:$0xff]
      %v53 = vld [vmem:[#allocation2 + $0x8] sm:$0xff]
      %v54 = vld [vmem:[#allocation2 + $0x10] sm:$0xff]
      %v55 = vld [vmem:[#allocation2 + $0x18] sm:$0xff]
      %v56 = vadd.f32 %v52, %v53
      %v57 = vadd.f32 %v56, %v54
      %v58 = vadd.f32 %v57, %v55
      %v59 = vadd.f32 %v58, 0.0
      %v60 = vadd.f32 %v51, %v59
      %61 = vst [vmem:[#allocation5] sm:$0xff] %v60
    $region17: #{tpu_custom_call.1} parent=1 // pred_fallthru
      _
    %p62 = scmp.lt.s32.totalorder %s45, 16
    %p63 = scmp.gt.s32.totalorder %s46, 16
    %p64 = pnand %p62, %p63
    %p65 = pneg %p64
    // Predicated region
    $region18: #{tpu_custom_call.1} parent=1 // pred_check
      _
    $region19: #{tpu_custom_call.1} parent=1 // pred_check_branch
      %67 = sbr.rel (%p64) target = $region21
    $region20: #{tpu_custom_call.1} parent=1 // pred_region
      %v68 = vld [vmem:[#allocation5] sm:$0xff]
      %v69 = vld [vmem:[#allocation2] sm:$0xff]
      %v70 = vld [vmem:[#allocation2 + $0x8] sm:$0xff]
      %v71 = vld [vmem:[#allocation2 + $0x10] sm:$0xff]
      %v72 = vld [vmem:[#allocation2 + $0x18] sm:$0xff]
      %v73 = vlaneseq
      %v74 = vshrl.u32 %v73, 7
      %v75 = vadd.s32 %v74, 8
      %v76 = vadd.s32 %v74, 16
      %v77 = vadd.s32 %v74, 24
      %v78 = vstv %s45
      %v79 = vadd.s32 %v74, %v78
      %v80 = vadd.s32 %v75, %v78
      %v81 = vadd.s32 %v76, %v78
      %v82 = vadd.s32 %v77, %v78
      %v83 = vstv 0
      %v84 = vadd.s32 %v79, %v83
      %v85 = vadd.s32 %v80, %v83
      %v86 = vadd.s32 %v81, %v83
      %v87 = vadd.s32 %v82, %v83
      %vm88 = vcmp.lt.s32.totalorder %v84, 16
      %vm89 = vcmp.lt.s32.totalorder %v85, 16
      %vm90 = vcmp.lt.s32.totalorder %v86, 16
      %vm91 = vcmp.lt.s32.totalorder %v87, 16
      %v92 = vsel %vm88, %v69, 0.0
      %v93 = vsel %vm89, %v70, 0.0
      %v94 = vsel %vm90, %v71, 0.0
      %v95 = vsel %vm91, %v72, 0.0
      %v96 = vadd.f32 %v92, %v93
      %v97 = vadd.f32 %v96, %v94
      %v98 = vadd.f32 %v97, %v95
      %v99 = vadd.f32 %v98, 0.0
      %v100 = vadd.f32 %v68, %v99
      %101 = vst [vmem:[#allocation5] sm:$0xff] %v100
    $region21: #{tpu_custom_call.1} parent=1 // pred_fallthru
      _
    // Predicated region
    $region22: #{tpu_custom_call.1} parent=1 // pred_check
      _
    $region23: #{tpu_custom_call.1} parent=1 // pred_check_branch
      %103 = sbr.rel (0) target = $region25
    $region24: #{tpu_custom_call.1} parent=1 // pred_region
      %s105 = ssub.s32 128, 128
      %106 = vsyncadd [#allocation4], %s105
      %s108 = sshll.u32 [#allocation5], 4
      %s109 = int_to_ptr.vmem [resolvable:$true] %s108
      %111 = dma.vmem_to_hbm [thread:$0]  %s109, 128, %s1, [#allocation4]
    $region25: #{tpu_custom_call.1} parent=1 // pred_fallthru
      _
    // Predicated region
    $region26: #{tpu_custom_call.1} parent=1 // pred_check
      _
    $region27: #{tpu_custom_call.1} parent=1 // pred_check_branch
      %113 = sbr.rel (0) target = $region29
    $region28: #{tpu_custom_call.1} parent=1 // pred_region
      %114 = dma.done [#allocation4], 128
    $region29: #{tpu_custom_call.1} parent=1 // pred_fallthru
      _
    %115 = vsyncpa [#allocation3], 1
    %116 = vsyncpa [#allocation4], 1

</llo_original>
